<compile_context>
chip_gen: v6e
topology: v6e:2x2x1
jax: 0.10.0
libtpu: 0.0.40
codegen_flags: <defaults>
</compile_context>

<pallas_src>
import functools

import numpy as np
import jax
import jax.numpy as jnp
from jax import lax
from jax.experimental import pallas as pl
from jax.experimental.pallas import tpu as pltpu


# ----------------------------- linear kernels ------------------------------

def _qkv_kernel(x_ref, w_ref, b_ref, o_ref):
    # x: (TR, D) bf16 ; w: (D, 3D) bf16 ; b: (1, 3D) f32 ; o: (TR, 3D) bf16.
    o_ref[...] = (jnp.dot(x_ref[...], w_ref[...],
                          preferred_element_type=jnp.float32)
                  + b_ref[...]).astype(o_ref.dtype)


def pallas_qkv(x2d_bf16, w_qkv, b_qkv, *, tile_r=512):
    R, D = x2d_bf16.shape
    D3 = w_qkv.shape[1]
    tr = min(tile_r, R)
    return pl.pallas_call(
        _qkv_kernel,
        out_shape=jax.ShapeDtypeStruct((R, D3), jnp.bfloat16),
        grid=(pl.cdiv(R, tr),),
        in_specs=[
            pl.BlockSpec((tr, D), lambda i: (i, 0)),
            pl.BlockSpec((D, D3), lambda i: (0, 0)),
            pl.BlockSpec((1, D3), lambda i: (0, 0)),
        ],
        out_specs=pl.BlockSpec((tr, D3), lambda i: (i, 0)),
        compiler_params=pltpu.CompilerParams(
            dimension_semantics=("parallel",),
            vmem_limit_bytes=32 * 1024 * 1024),
    )(x2d_bf16, w_qkv, b_qkv)


def _out_proj_kernel(x_ref, w_ref, b_ref, o_ref):
    # x: (TR, D) bf16 (core already wrote bf16) ; w: (D, Dout) bf16 ; o: f32.
    o_ref[...] = jnp.dot(x_ref[...], w_ref[...],
                         preferred_element_type=jnp.float32) + b_ref[...]


def pallas_out_proj(x2d_bf16, w, b, *, tile_r=512):
    R, D = x2d_bf16.shape
    Dout = w.shape[1]
    tr = min(tile_r, R)
    return pl.pallas_call(
        _out_proj_kernel,
        out_shape=jax.ShapeDtypeStruct((R, Dout), jnp.float32),
        grid=(pl.cdiv(R, tr),),
        in_specs=[
            pl.BlockSpec((tr, D), lambda i: (i, 0)),
            pl.BlockSpec((D, Dout), lambda i: (0, 0)),
            pl.BlockSpec((1, Dout), lambda i: (0, 0)),
        ],
        out_specs=pl.BlockSpec((tr, Dout), lambda i: (i, 0)),
        compiler_params=pltpu.CompilerParams(
            dimension_semantics=("parallel",),
            vmem_limit_bytes=32 * 1024 * 1024),
    )(x2d_bf16, w, b)


# ------------------------------- core kernel --------------------------------

def _performer_core_kernel(qkv_ref, keep_ref, proj_bd_ref, sdiag_ref,
                           e_feat_ref, sel_f2h_ref, e_dim_ref, blk_ref,
                           o_ref, *, heads):
    # One batch per grid step.
    #   qkv:     (N, 3D)  bf16   columns [0,D)=Q, [D,2D)=K, [2D,3D)=V
    #   keep:    (N, 1)   f32    1.0 where NOT masked
    #   proj_bd: (D, H*M) bf16   block-diag of data_normalizer * proj.T
    #   sdiag:   (D, H)   f32    block 0/1 pattern scaled by 0.5*dn^2
    #   e_feat:  (H, H*M) f32    0/1 head -> feature broadcast
    #   sel_f2h: (H*M, H) f32    0/1 feature -> head reduction
    #   e_dim:   (H, D)   f32    0/1 head -> model-dim broadcast
    #   blk:     (H*M, D) f32    0/1 block-diag mask for the context matrix
    #   o:       (N, D)   bf16
    qkv = qkv_ref[...]
    d3 = qkv.shape[-1]
    d = d3 // 3
    dh = d // heads
    m = dh // 2
    ratio = float(m) ** -0.5
    eps = 1e-4

    q = qkv[:, :d]
    k = qkv[:, d:2 * d]
    v = qkv[:, 2 * d:] * keep_ref[...].astype(qkv.dtype)     # V-mask, one multiply

    # Random-feature projection of ALL heads in one full-width MXU matmul.
    proj_bd = proj_bd_ref[...]
    qd = jnp.dot(q, proj_bd, preferred_element_type=jnp.float32)   # (N, H*M)
    kd = jnp.dot(k, proj_bd, preferred_element_type=jnp.float32)   # (N, H*M)

    # diag term (0.5 * dn^2 folded into sdiag); exp math stays in f32.
    q32 = q.astype(jnp.float32)
    k32 = k.astype(jnp.float32)
    diag_q = jnp.dot(q32 * q32, sdiag_ref[...],
                     preferred_element_type=jnp.float32)            # (N, H)
    diag_k = jnp.dot(k32 * k32, sdiag_ref[...],
                     preferred_element_type=jnp.float32)            # (N, H)

    # Per-head maxima — cheap VPU/XLU reductions only (no matmuls / no stores
    # in this loop, so vreg pressure stays bounded).
    qmax_cols = []
    kmax_cols = []
    for h in range(heads):
        sl = slice(h * m, (h + 1) * m)
        qmax_cols.append(jnp.max(qd[:, sl], axis=-1, keepdims=True))   # (N, 1)
        kmax_cols.append(jnp.max(jnp.max(kd[:, sl], axis=-1, keepdims=True),
                                 axis=0, keepdims=True))               # (1, 1)
    qmax_h = jnp.concatenate(qmax_cols, axis=-1)                       # (N, H)
    kmax_h = jnp.concatenate(kmax_cols, axis=-1)                       # (1, H)

    # Broadcast (diag + max) from per-head to per-feature width via a 0/1 matmul.
    e_feat = e_feat_ref[...]
    sub_q = jnp.dot(diag_q + qmax_h, e_feat,
                    preferred_element_type=jnp.float32)                # (N, H*M)
    sub_k = jnp.dot(diag_k + kmax_h, e_feat,
                    preferred_element_type=jnp.float32)                # (N, H*M)

    q_prime = ratio * (jnp.exp(qd - sub_q) + eps)                      # (N, H*M)
    k_prime = ratio * (jnp.exp(kd - sub_k) + eps)                      # (N, H*M)

    # Linear (Performer) attention, all heads at once.
    k_cumsum = jnp.sum(k_prime, axis=0, keepdims=True)                 # (1, H*M)
    denom = jnp.dot(q_prime * k_cumsum, sel_f2h_ref[...],
                    preferred_element_type=jnp.float32)                # (N, H)
    d_inv = pl.reciprocal(denom, approx=True)                          # (N, H)
    d_inv_dim = jnp.dot(d_inv, e_dim_ref[...],
                        preferred_element_type=jnp.float32)            # (N, D)

    kp16 = k_prime.astype(jnp.bfloat16)
    qp16 = q_prime.astype(jnp.bfloat16)
    # Batched k'^T @ v over the (large) N axis; cross-head blocks masked out.
    context = lax.dot_general(kp16, v, (((0,), (0,)), ((), ())),
                              preferred_element_type=jnp.float32)      # (H*M, D)
    context = context * blk_ref[...]
    out = jnp.dot(qp16, context.astype(jnp.bfloat16),
                  preferred_element_type=jnp.float32)                  # (N, D)

    # Single lane-dense full-width store.
    o_ref[...] = (out * d_inv_dim).astype(o_ref.dtype)


def pallas_performer_core(qkv, keep, params, heads):
    B, N, D3 = qkv.shape
    D = D3 // 3
    hm = params['proj_bd'].shape[1]

    def const(shape):
        return pl.BlockSpec(shape, lambda b: (0, 0))

    kernel = functools.partial(_performer_core_kernel, heads=heads)
    return pl.pallas_call(
        kernel,
        out_shape=jax.ShapeDtypeStruct((B, N, D), jnp.bfloat16),
        grid=(B,),
        in_specs=[
            pl.BlockSpec((None, N, D3), lambda b: (b, 0, 0)),
            pl.BlockSpec((None, N, 1), lambda b: (b, 0, 0)),
            const((D, hm)),        # proj_bd
            const((D, heads)),     # sdiag
            const((heads, hm)),    # e_feat
            const((hm, heads)),    # sel_f2h
            const((heads, D)),     # e_dim
            const((hm, D)),        # blk
        ],
        out_specs=pl.BlockSpec((None, N, D), lambda b: (b, 0, 0)),
        compiler_params=pltpu.CompilerParams(
            dimension_semantics=("parallel",),
            vmem_limit_bytes=32 * 1024 * 1024),
    )(qkv, keep, params['proj_bd'], params['sdiag'], params['e_feat'],
      params['sel_f2h'], params['e_dim'], params['blk'])


# --------------------------- parameter creation -----------------------------

def gaussian_orthogonal_random_matrix(key, nb_rows, nb_cols):
    """Deterministic port of the torch helper (scaling=0)."""
    k1, k2 = jax.random.split(key)
    nb_full_blocks = nb_rows // nb_cols
    keys = jax.random.split(k1, nb_full_blocks + 1)

    def ortho_chunk(kk):
        block = np.asarray(jax.random.normal(kk, (nb_cols, nb_cols), jnp.float32))
        qmat, _ = np.linalg.qr(block)
        return qmat.T

    blocks = [ortho_chunk(keys[i]) for i in range(nb_full_blocks)]
    rem = nb_rows - nb_full_blocks * nb_cols
    if rem > 0:
        blocks.append(ortho_chunk(keys[nb_full_blocks])[:rem])
    final = np.concatenate(blocks, axis=0)
    multiplier = np.linalg.norm(
        np.asarray(jax.random.normal(k2, (nb_rows, nb_cols), jnp.float32)), axis=1)
    return np.asarray(multiplier[:, None] * final, dtype=np.float32)


def init_params(key, dim, heads):
    dh = dim // heads
    m = dh // 2
    hm = heads * m
    ks = jax.random.split(key, 9)

    def linear_init(kw, kb, dout, din):
        w = jax.random.normal(kw, (dout, din), jnp.float32) * 0.05
        b = jax.random.normal(kb, (dout,), jnp.float32) * 0.05
        return w, b

    wq, bq = linear_init(ks[0], ks[1], dim, dim)
    wk, bk = linear_init(ks[2], ks[3], dim, dim)
    wv, bv = linear_init(ks[4], ks[5], dim, dim)
    wo, bo = linear_init(ks[6], ks[7], dim, dim)
    proj = gaussian_orthogonal_random_matrix(ks[8], m, dh)      # (M, Dh)

    # Constant matrices hoisted out of the forward path.
    dn = float(dh) ** -0.25
    proj_bd = np.zeros((dim, hm), np.float32)     # block-diag dn * proj.T
    sdiag = np.zeros((dim, heads), np.float32)    # 0.5*dn^2 selector
    e_feat = np.zeros((heads, hm), np.float32)    # head -> feature
    sel_f2h = np.zeros((hm, heads), np.float32)   # feature -> head
    e_dim = np.zeros((heads, dim), np.float32)    # head -> model dim
    blk = np.zeros((hm, dim), np.float32)         # context block-diag mask
    for h in range(heads):
        proj_bd[h * dh:(h + 1) * dh, h * m:(h + 1) * m] = dn * proj.T
        sdiag[h * dh:(h + 1) * dh, h] = 0.5 * dn * dn
        e_feat[h, h * m:(h + 1) * m] = 1.0
        sel_f2h[h * m:(h + 1) * m, h] = 1.0
        e_dim[h, h * dh:(h + 1) * dh] = 1.0
        blk[h * m:(h + 1) * m, h * dh:(h + 1) * dh] = 1.0

    params = dict(
        w_qkv=jnp.concatenate([wq.T, wk.T, wv.T], axis=1).astype(jnp.bfloat16),
        b_qkv=jnp.concatenate([bq, bk, bv]).reshape(1, -1).astype(jnp.float32),
        w_out=wo.T.astype(jnp.bfloat16),
        b_out=bo.reshape(1, -1).astype(jnp.float32),
        proj_bd=jnp.asarray(proj_bd, jnp.bfloat16),
        sdiag=jnp.asarray(sdiag),
        e_feat=jnp.asarray(e_feat),
        sel_f2h=jnp.asarray(sel_f2h),
        e_dim=jnp.asarray(e_dim),
        blk=jnp.asarray(blk),
    )
    ref_params = dict(wq=wq, bq=bq, wk=wk, bk=bk, wv=wv, bv=bv,
                      wo=wo, bo=bo, proj=jnp.asarray(proj))
    return params, ref_params


# ------------------------------ forward pass --------------------------------

def performer_attention_forward(params, x, mask, heads):
    B, N, D = x.shape
    x2d = x.reshape(B * N, D).astype(jnp.bfloat16)            # single cast, read once
    keep = 1.0 - mask.reshape(B, N, 1).astype(jnp.float32)    # 1.0 where NOT masked

    qkv = pallas_qkv(x2d, params['w_qkv'], params['b_qkv'])   # (R, 3D) bf16
    qkv = qkv.reshape(B, N, 3 * D)                            # free reshape

    out = pallas_performer_core(qkv, keep, params, heads)     # (B, N, D) bf16
    y = pallas_out_proj(out.reshape(B * N, D), params['w_out'], params['b_out'])
    # TODO(synk): nn.Dropout(0.1) is identity at inference; stochastic training
    # dropout and the projection-matrix auto-redraw counter are not reproduced.
    return y.reshape(B, N, D)


# plain-JAX reference of the same math, used only for a correctness check
def reference_forward(params, x, mask, heads):
    B, N, D = x.shape
    Dh = D // heads
    M = params['proj'].shape[0]
    q = x @ params['wq'].T + params['bq']
    k = x @ params['wk'].T + params['bk']
    v = x @ params['wv'].T + params['bv']
    v = jnp.where(mask, 0.0, v)

    def sh(t):
        return t.reshape(B, N, heads, Dh).transpose(0, 2, 1, 3)

    q, k, v = map(sh, (q, k, v))
    dn = float(Dh) ** -0.25
    ratio = float(M) ** -0.5
    eps = 1e-4
    proj = params['proj']
    qd = jnp.einsum('bhid,jd->bhij', dn * q, proj)
    kd = jnp.einsum('bhid,jd->bhij', dn * k, proj)
    diag_q = jnp.sum(q * q, -1, keepdims=True) / 2.0 * dn * dn
    diag_k = jnp.sum(k * k, -1, keepdims=True) / 2.0 * dn * dn
    qp = ratio * (jnp.exp(qd - diag_q - jnp.max(qd, -1, keepdims=True)) + eps)
    kp = ratio * (jnp.exp(kd - diag_k
                          - jnp.max(kd, axis=(-1, -2), keepdims=True)) + eps)
    k_cumsum = kp.sum(-2)
    D_inv = 1.0 / jnp.einsum('bhnd,bhd->bhn', qp, k_cumsum)
    context = jnp.einsum('bhnd,bhne->bhde', kp, v)
    out = jnp.einsum('bhde,bhnd,bhn->bhne', context, qp, D_inv)
    out = out.transpose(0, 2, 1, 3).reshape(B, N, D)
    return out @ params['wo'].T + params['bo']


if __name__ == "__main__":
    dim, heads = 32, 4
    B, N = 2, 8
    key = jax.random.PRNGKey(0)
    kp, kx, km = jax.random.split(key, 3)

    params, ref_params = init_params(kp, dim, heads)
    x = jax.random.normal(kx, (B, N, dim), jnp.float32)
    mask = jax.random.uniform(km, (B, N, 1)) < 0.2   # bool, broadcasts over features

    out = performer_attention_forward(params, x, mask, heads)
    out = jax.block_until_ready(out)
    assert out.shape == (B, N, dim)

    ref = reference_forward(ref_params, x, mask, heads)
    np.testing.assert_allclose(np.asarray(out, dtype=np.float32), np.asarray(ref),
                               rtol=2e-2, atol=2e-2)
    print("KERNEL_OK")
</pallas_src>

<mosaic_0001>
module attributes {stable_mosaic.version = 11 : i64} {
  func.func @_qkv_kernel(%arg0: i32, %arg1: memref<16x32xbf16, #tpu.memory_space<vmem>>, %arg2: memref<32x96xbf16, #tpu.memory_space<vmem>>, %arg3: memref<1x96xf32, #tpu.memory_space<vmem>>, %arg4: memref<16x96xbf16, #tpu.memory_space<vmem>>) attributes {dimension_semantics = [#tpu.dimension_semantics<parallel>], iteration_bounds = array<i64: 1>, scalar_prefetch = 0 : i64, scratch_operands = 0 : i64, tpu.core_type = #tpu.core_type<tc>, window_params = [{transform_indices = @transform_0, window_bounds = array<i64: 16, 32>}, {pipeline_mode = #tpu.pipeline_mode<synchronous>, transform_indices = @transform_1, window_bounds = array<i64: 32, 96>}, {pipeline_mode = #tpu.pipeline_mode<synchronous>, transform_indices = @transform_2, window_bounds = array<i64: 1, 96>}, {transform_indices = @transform_3, window_bounds = array<i64: 16, 96>}]} {
    %c0 = arith.constant 0 : index
    %c0_0 = arith.constant 0 : index
    %0 = vector.load %arg1[%c0, %c0_0] : memref<16x32xbf16, #tpu.memory_space<vmem>>, vector<16x32xbf16>
    %c0_1 = arith.constant 0 : index
    %c0_2 = arith.constant 0 : index
    %1 = vector.load %arg2[%c0_1, %c0_2] : memref<32x96xbf16, #tpu.memory_space<vmem>>, vector<32x96xbf16>
    %cst = arith.constant dense<0.000000e+00> : vector<16x96xf32>
    %2 = tpu.matmul %0, %1, %cst {dimension_numbers = #tpu.dot_dimension_numbers<[1], [0], [0], [1], [0, 0, 1, 1], [], []>} : vector<16x32xbf16>, vector<32x96xbf16>, vector<16x96xf32> -> vector<16x96xf32>
    %c0_3 = arith.constant 0 : index
    %c0_4 = arith.constant 0 : index
    %3 = vector.load %arg3[%c0_3, %c0_4] : memref<1x96xf32, #tpu.memory_space<vmem>>, vector<1x96xf32>
    %4 = vector.broadcast %3 : vector<1x96xf32> to vector<16x96xf32>
    %5 = arith.addf %2, %4 : vector<16x96xf32>
    %6 = arith.truncf %5 : vector<16x96xf32> to vector<16x96xbf16>
    %c0_5 = arith.constant 0 : index
    %c0_6 = arith.constant 0 : index
    %7 = vector.load %arg4[%c0_5, %c0_6] : memref<16x96xbf16, #tpu.memory_space<vmem>>, vector<16x96xbf16>
    tpu.vector_store %arg4[%c0_5, %c0_6], %6 {strides = array<i32>} : memref<16x96xbf16, #tpu.memory_space<vmem>>, vector<16x96xbf16>,
    return
  }
  func.func @transform_0(%arg0: i32) -> (i32, i32) {
    %c0_i32 = arith.constant 0 : i32
    %c0_i32_0 = arith.constant 0 : i32
    return %arg0, %c0_i32 : i32, i32
  }
  func.func @transform_1(%arg0: i32) -> (i32, i32) {
    %c0_i32 = arith.constant 0 : i32
    %c0_i32_0 = arith.constant 0 : i32
    %c0_i32_1 = arith.constant 0 : i32
    return %c0_i32, %c0_i32_0 : i32, i32
  }
  func.func @transform_2(%arg0: i32) -> (i32, i32) {
    %c0_i32 = arith.constant 0 : i32
    %c0_i32_0 = arith.constant 0 : i32
    %c0_i32_1 = arith.constant 0 : i32
    return %c0_i32, %c0_i32_0 : i32, i32
  }
  func.func @transform_3(%arg0: i32) -> (i32, i32) {
    %c0_i32 = arith.constant 0 : i32
    %c0_i32_0 = arith.constant 0 : i32
    return %arg0, %c0_i32 : i32, i32
  }
}

</mosaic_0001>

<llo_original>
// kernel: tpu_custom_call.1
$region0: #{tpu_custom_call.1}
  #allocation0 [shape = 'u32[]', space=smem, size = 0x4, offset = 0x4, fixed_abs, tag = 'smem constant byte address 0x4 - core index']
  #allocation1 [shape = 'u32[144,128]{1,0:T(1,128)}', space=vmem, size = 0x12000, scoped, tag = 'internal scratch']
  %s0 = inlined_call_operand.hbm [shape: bf16[16,32], index: 0, kind: input, shape index: {}]
  %s1 = inlined_call_operand.hbm [shape: bf16[32,96], index: 1, kind: input, shape index: {}]
  %s2 = inlined_call_operand.vmem [shape: f32[1,96], index: 2, kind: input, shape index: {}]
  %s3 = inlined_call_operand.hbm [shape: bf16[16,96], index: 3, kind: output, shape index: {}]
  %s4 = sld [smem:[#allocation0]]
  $region30: #{tpu_custom_call.1} parent=0
    _
  %s6 = ssub.s32 1, %s4
  %s7 = scalar_select 0, %s6, %s4
  $region1: #{tpu_custom_call.1} parent=0
    #allocation2 [shape = 'u8[4096]{0}', space=vmem, size = 0x1000, scoped, tag = 'input window, operand 0, single buffered']
    #allocation3 [shape = 's32[1]{0}', space=sflag, size = 0x4, scoped, tag = 'scoped memory for tpu_custom_call.1']
    #allocation4 [shape = 's32[1]{0}', space=sflag, size = 0x4, scoped, tag = 'scoped memory for tpu_custom_call.1']
    #allocation5 [shape = 'u8[8192]{0}', space=vmem, size = 0x2000, scoped, tag = 'input window, operand 1, single buffered']
    #allocation6 [shape = 's32[1]{0}', space=sflag, size = 0x4, scoped, tag = 'scoped memory for tpu_custom_call.1']
    #allocation7 [shape = 'u8[4096]{0}', space=vmem, size = 0x1000, scoped, tag = 'output window, operand 0, single buffered']
    %8 = vsyncpa [#allocation3], 0
    %9 = vsyncpa [#allocation6], 0
    %10 = vsyncpa [#allocation4], 0
    // Predicated region
    $region2: #{tpu_custom_call.1} parent=1 // pred_check
      _
    $region3: #{tpu_custom_call.1} parent=1 // pred_check_branch
      %12 = sbr.rel (0) target = $region5
    $region4: #{tpu_custom_call.1} parent=1 // pred_region
      %s14 = ssub.s32 128, 128
      %15 = vsyncadd [#allocation3], %s14
      %s16 = sshll.u32 [#allocation2], 4
      %s17 = int_to_ptr.vmem [resolvable:$true] %s16
      %22 = dma.hbm_to_vmem [thread:$0]  %s0, 128, %s17, [#allocation3], 64, 64, 4
    $region5: #{tpu_custom_call.1} parent=1 // pred_fallthru
      _
    // Predicated region
    $region6: #{tpu_custom_call.1} parent=1 // pred_check
      _
    $region7: #{tpu_custom_call.1} parent=1 // pred_check_branch
      %24 = sbr.rel (0) target = $region9
    $region8: #{tpu_custom_call.1} parent=1 // pred_region
      %s26 = ssub.s32 256, 256
      %27 = vsyncadd [#allocation6], %s26
      %s28 = sshll.u32 [#allocation5], 4
      %s29 = int_to_ptr.vmem [resolvable:$true] %s28
      %34 = dma.hbm_to_vmem [thread:$0]  %s1, 256, %s29, [#allocation6], 64, 64, 4
    $region9: #{tpu_custom_call.1} parent=1 // pred_fallthru
      _
    // Predicated region
    $region10: #{tpu_custom_call.1} parent=1 // pred_check
      _
    $region11: #{tpu_custom_call.1} parent=1 // pred_check_branch
      %36 = sbr.rel (0) target = $region13
    $region12: #{tpu_custom_call.1} parent=1 // pred_region
      _
    $region13: #{tpu_custom_call.1} parent=1 // pred_fallthru
      _
    // Predicated region
    $region14: #{tpu_custom_call.1} parent=1 // pred_check
      _
    $region15: #{tpu_custom_call.1} parent=1 // pred_check_branch
      %38 = sbr.rel (0) target = $region17
    $region16: #{tpu_custom_call.1} parent=1 // pred_region
      %39 = dma.done [#allocation3], 128
    $region17: #{tpu_custom_call.1} parent=1 // pred_fallthru
      _
    // Predicated region
    $region18: #{tpu_custom_call.1} parent=1 // pred_check
      _
    $region19: #{tpu_custom_call.1} parent=1 // pred_check_branch
      %41 = sbr.rel (0) target = $region21
    $region20: #{tpu_custom_call.1} parent=1 // pred_region
      %42 = dma.done [#allocation6], 256
    $region21: #{tpu_custom_call.1} parent=1 // pred_fallthru
      _
    %v44 = vld [vmem:[#allocation2] sm:$0xf]
    %v45 = vld [vmem:[#allocation2 + $0x4] sm:$0xf]
    %v46 = vld [vmem:[#allocation5] sm:$0xf]
    %v47 = vld [vmem:[#allocation5 + $0x4] sm:$0xf]
    %v48 = vld [vmem:[#allocation5 + $0x8] sm:$0xf]
    %v49 = vld [vmem:[#allocation5 + $0xc] sm:$0xf]
    %v50 = vld [vmem:[%s2] sm:$0x1]
    %v52 = vlaneseq
    %v53 = vshrl.u32 %v52, 7
    %v54 = vsub.s32 0, %v53
    %v55 = vrot.slane %v50, %v54
    %v59 = vunpack.c.l.b16 %v44
    %v60 = vunpack.c.l.b16 %v45
    %v61 = vpack.c.b16 %v60, %v59
    %v66 = vunpack.c.l.b16 %v46
    %v67 = vunpack.c.l.b16 %v47
    %v68 = vunpack.c.l.b16 %v48
    %v69 = vunpack.c.l.b16 %v49
    %v70 = vpack.c.b16 %v67, %v66
    %v71 = vpack.c.b16 %v69, %v68
    %vm74 = vcmask 261120
    %v76 = vsel %vm74, %v61, 0
    %78 = vmatprep.subr.bf16.mxu0 0
    %79 = vmatpush1.bf16.msra.mxu0 0
    %80 = vmatprep.subr.bf16.mxu0 0
    %81 = vmatpush1.bf16.msra.mxu0 0
    %82 = vmatprep.subr.bf16.mxu0 0
    %83 = vmatpush1.bf16.msra.mxu0 0
    %84 = vmatprep.subr.bf16.mxu0 0
    %85 = vmatpush1.bf16.msra.mxu0 0
    %86 = vmatprep.subr.bf16.mxu0 0
    %87 = vmatpush1.bf16.msra.mxu0 0
    %88 = vmatprep.subr.bf16.mxu0 0
    %89 = vmatpush1.bf16.msra.mxu0 0
    %90 = vmatprep.subr.bf16.mxu0 0
    %91 = vmatpush1.bf16.msra.mxu0 %v71
    %92 = vmatprep.subr.bf16.mxu0 0
    %93 = vmatpush1.bf16.msra.mxu0 %v70
    %94 = vmatprep.subr.bf16.mxu0 0
    %95 = vmatpush2.bf16.msra.mxu0 0
    %96 = vmatprep.subr.bf16.mxu0 0
    %97 = vmatpush2.bf16.msra.mxu0 0
    %98 = vmatprep.subr.bf16.mxu0 0
    %99 = vmatpush2.bf16.msra.mxu0 0
    %100 = vmatprep.subr.bf16.mxu0 0
    %101 = vmatpush2.bf16.msra.mxu0 0
    %102 = vmatprep.subr.bf16.mxu0 0
    %103 = vmatpush2.bf16.msra.mxu0 0
    %104 = vmatprep.subr.bf16.mxu0 0
    %105 = vmatpush2.bf16.msra.mxu0 0
    %106 = vmatprep.subr.bf16.mxu0 0
    %107 = vmatpush2.bf16.msra.mxu0 0
    %108 = vmatprep.subr.bf16.mxu0 0
    %109 = vmatpush2.bf16.msra.mxu0 0
    %110 = vmatprep.mubr.bf16.mxu0 0
    %111 = vmatmul.mubr.bf16.gmra.mxu0 %v76
    %v112 = vpop.f32.mrf.mxu0
    %v113 = vadd.f32 %v55, %v112
    %v114 = vpop.f32.mrf.mxu0
    %v115 = vpop.f32.mrf.mxu0
    %v116 = vadd.f32 %v55, %v115
    %v117 = vpop.f32.mrf.mxu0
    %118 = vdwg.mxu0
    %v119 = vpack.c.bf16 %v116, %v113
    %v121 = vunpack.c.l.b16 %v119
    %v122 = vunpack.c.h.b16 %v119
    %v123 = vpack.c.b16 %v121, %v121
    %v124 = vpack.c.b16 %v122, %v122
    %vm127 = vcmask 781312
    %128 = vst.msk [vmem:[#allocation7] sm:$0xf] %vm127, %v123
    %129 = vst.msk [vmem:[#allocation7 + $0x4] sm:$0xf] %vm127, %v124
    // Predicated region
    $region22: #{tpu_custom_call.1} parent=1 // pred_check
      _
    $region23: #{tpu_custom_call.1} parent=1 // pred_check_branch
      %131 = sbr.rel (0) target = $region25
    $region24: #{tpu_custom_call.1} parent=1 // pred_region
      %s133 = ssub.s32 128, 128
      %134 = vsyncadd [#allocation4], %s133
      %s135 = sshll.u32 [#allocation7], 4
      %s136 = int_to_ptr.vmem [resolvable:$true] %s135
      %141 = dma.vmem_to_hbm [thread:$0]  %s136, 128, %s3, [#allocation4], 64, 64, 4
    $region25: #{tpu_custom_call.1} parent=1 // pred_fallthru
      _
    // Predicated region
    $region26: #{tpu_custom_call.1} parent=1 // pred_check
      _
    $region27: #{tpu_custom_call.1} parent=1 // pred_check_branch
      %143 = sbr.rel (0) target = $region29
    $region28: #{tpu_custom_call.1} parent=1 // pred_region
      %144 = dma.done [#allocation4], 128
    $region29: #{tpu_custom_call.1} parent=1 // pred_fallthru
      _
    %145 = vsyncpa [#allocation3], 1
    %146 = vsyncpa [#allocation6], 1
    %147 = vsyncpa [#allocation4], 1

</llo_original>
